<compile_context>
chip_gen: v5e
topology: v5e:2x2
jax: 0.10.0
libtpu: 0.0.40
codegen_flags: <defaults>
</compile_context>

<pallas_src>
import functools

import jax
import jax.numpy as jnp
from jax.experimental import pallas as pl
from jax.experimental.pallas import tpu as pltpu


def _attention_kernel(x_ref, wq_ref, wk_ref, wv_ref, wo_ref, o_ref, *,
                      num_heads, head_dim, bt, n_tokens, dim, dot_dtype):
    # x_ref : (bt, N, dim)            tokens for `bt` batch elements
    # wq/wk/wv_ref : (num_heads, dim, head_dim)   (w_q pre-scaled by softmax scale)
    # wo_ref: (num_heads, head_dim, dim)
    # o_ref : (bt, N, dim)
    x2d = x_ref[...].reshape(bt * n_tokens, dim).astype(dot_dtype)

    acc = jnp.zeros((bt * n_tokens, dim), jnp.float32)
    for h in range(num_heads):  # static loop; head index is a free leading-dim slice
        # K = dim contraction matmuls (full MXU width), f32 accumulation.
        q = jnp.dot(x2d, wq_ref[h], preferred_element_type=jnp.float32)
        k = jnp.dot(x2d, wk_ref[h], preferred_element_type=jnp.float32)
        v = jnp.dot(x2d, wv_ref[h], preferred_element_type=jnp.float32)
        q = q.reshape(bt, n_tokens, head_dim)
        k = k.reshape(bt, n_tokens, head_dim)
        v = v.reshape(bt, n_tokens, head_dim)

        # Scores: contraction over head_dim via batched einsum (no explicit k.T).
        s = jnp.einsum("bqh,bkh->bqk", q.astype(dot_dtype), k.astype(dot_dtype),
                       preferred_element_type=jnp.float32)
        # Numerically stable softmax (scale already folded into w_q).
        m = jnp.max(s, axis=-1, keepdims=True)
        p = jnp.exp(s - m)
        l = jnp.sum(p, axis=-1, keepdims=True)

        ho = jnp.einsum("bqk,bkh->bqh", p.astype(dot_dtype), v.astype(dot_dtype),
                        preferred_element_type=jnp.float32)
        # Normalize after the PV matmul: N*head_dim multiplies instead of N*N,
        # reciprocal on the EUP slot.
        ho = ho * pl.reciprocal(l, approx=True)

        # Accumulate-over-heads output projection (no lane-axis concat).
        acc = acc + jnp.dot(
            ho.reshape(bt * n_tokens, head_dim).astype(dot_dtype),
            wo_ref[h], preferred_element_type=jnp.float32)

    o_ref[...] = acc.reshape(bt, n_tokens, dim).astype(o_ref.dtype)


def _pick_batch_tile(batch, n_tokens, dim, attn_dim, itemsize, vmem_budget_bytes):
    """Largest divisor of `batch` that fits the VMEM budget and keeps >= 2 grid steps."""
    weights_bytes = 2 * 4 * dim * attn_dim * itemsize  # qkv + proj weights, pipelined
    best = 1
    for bt in range(1, batch + 1):
        if batch % bt != 0:
            continue
        if batch >= 2 and batch // bt < 2:
            continue  # keep >= 2 parallel grid steps so both v7x TensorCores get work
        per_step = (
            2 * 2 * bt * n_tokens * dim * itemsize      # in/out blocks, double-buffered
            + 5 * bt * n_tokens * dim * 4               # f32 acc + q/k/v-ish intermediates
            + 2 * bt * n_tokens * n_tokens * 4          # scores / probs
        )
        if weights_bytes + per_step <= vmem_budget_bytes:
            best = bt
    return best


def metaformer_attention(x_nchw, w_qkv, w_proj, *, head_dim=32, mxu_dtype=None,
                         batch_tile=None, vmem_budget_bytes=32 * 1024 * 1024):
    """x_nchw: (B, dim, H, W); w_qkv: (3*attn_dim, dim); w_proj: (dim, attn_dim).

    mxu_dtype: optionally jnp.bfloat16 to feed the MXU bf16 operands (v6e/v7x)
    while keeping f32 accumulation and f32 softmax math.
    """
    B, dim, H, W = x_nchw.shape
    num_heads = dim // head_dim
    attn_dim = num_heads * head_dim
    N = H * W
    scale = head_dim ** (-0.5)

    # NCHW -> NHWC -> (B, N, dim) tokens (trace-time layout plumbing).
    x_tokens = jnp.transpose(x_nchw, (0, 2, 3, 1)).reshape(B, N, dim)

    # Weight prep (trace-time): split qkv into per-head (dim, head_dim) slabs with
    # the head index on the LEADING axis so the kernel never slices the lane axis,
    # and fold the softmax scale into w_q.
    w3 = w_qkv.reshape(3, num_heads, head_dim, dim)                 # (3, nh, hd, dim)
    wq = jnp.transpose(w3[0], (0, 2, 1)) * jnp.asarray(scale, w_qkv.dtype)  # (nh, dim, hd)
    wk = jnp.transpose(w3[1], (0, 2, 1))                            # (nh, dim, hd)
    wv = jnp.transpose(w3[2], (0, 2, 1))                            # (nh, dim, hd)
    wo = w_proj.T.reshape(num_heads, head_dim, dim)                 # (nh, hd, dim)

    if mxu_dtype is not None:
        wq, wk, wv, wo = (w.astype(mxu_dtype) for w in (wq, wk, wv, wo))
        dot_dtype = mxu_dtype
    else:
        dot_dtype = x_tokens.dtype

    if batch_tile is None:
        batch_tile = _pick_batch_tile(
            B, N, dim, attn_dim, jnp.dtype(x_tokens.dtype).itemsize, vmem_budget_bytes)
    assert B % batch_tile == 0, "batch_tile must divide the batch"

    kernel = functools.partial(
        _attention_kernel, num_heads=num_heads, head_dim=head_dim,
        bt=batch_tile, n_tokens=N, dim=dim, dot_dtype=dot_dtype)

    out_tokens = pl.pallas_call(
        kernel,
        out_shape=jax.ShapeDtypeStruct((B, N, dim), x_tokens.dtype),
        grid_spec=pltpu.PrefetchScalarGridSpec(
            num_scalar_prefetch=0,
            grid=(B // batch_tile,),
            in_specs=[
                pl.BlockSpec((batch_tile, N, dim), lambda b: (b, 0, 0)),
                pl.BlockSpec((num_heads, dim, head_dim), lambda b: (0, 0, 0)),
                pl.BlockSpec((num_heads, dim, head_dim), lambda b: (0, 0, 0)),
                pl.BlockSpec((num_heads, dim, head_dim), lambda b: (0, 0, 0)),
                pl.BlockSpec((num_heads, head_dim, dim), lambda b: (0, 0, 0)),
            ],
            out_specs=pl.BlockSpec((batch_tile, N, dim), lambda b: (b, 0, 0)),
        ),
        compiler_params=pltpu.CompilerParams(
            dimension_semantics=("parallel",),
            vmem_limit_bytes=64 * 1024 * 1024,
        ),
    )(x_tokens, wq, wk, wv, wo)

    # (B, N, dim) -> NHWC -> NCHW
    return jnp.transpose(out_tokens.reshape(B, H, W, dim), (0, 3, 1, 2))


def _reference(x_nchw, w_qkv, w_proj, *, head_dim=32):
    """Pure-JAX reference mirroring the PyTorch forward."""
    B, dim, H, W = x_nchw.shape
    num_heads = dim // head_dim
    attn_dim = num_heads * head_dim
    N = H * W
    scale = head_dim ** (-0.5)

    x = jnp.transpose(x_nchw, (0, 2, 3, 1)).reshape(B, N, dim)
    qkv = x @ w_qkv.T  # (B, N, 3*attn_dim)
    qkv = qkv.reshape(B, N, 3, num_heads, head_dim).transpose(2, 0, 3, 1, 4)
    q, k, v = qkv[0], qkv[1], qkv[2]  # (B, nh, N, hd)
    s = jnp.einsum("bhqd,bhkd->bhqk", q, k) * scale
    p = jax.nn.softmax(s, axis=-1)
    o = jnp.einsum("bhqk,bhkd->bhqd", p, v)            # (B, nh, N, hd)
    o = o.transpose(0, 2, 1, 3).reshape(B, H, W, attn_dim)
    o = o @ w_proj.T                                    # (B, H, W, dim)
    return jnp.transpose(o, (0, 3, 1, 2))


if __name__ == "__main__":
    # Small shapes consistent with the module: dim must be a multiple of head_dim=32.
    B, dim, H, W = 2, 64, 8, 8
    head_dim = 32
    num_heads = dim // head_dim
    attn_dim = num_heads * head_dim

    key = jax.random.PRNGKey(0)
    kx, kq, kp = jax.random.split(key, 3)
    x = jax.random.normal(kx, (B, dim, H, W), dtype=jnp.float32)
    # Deterministic synthetic parameters (nn.Linear-like scale), no checkpoint load.
    w_qkv = jax.random.normal(kq, (3 * attn_dim, dim), dtype=jnp.float32) * (dim ** -0.5)
    w_proj = jax.random.normal(kp, (dim, attn_dim), dtype=jnp.float32) * (attn_dim ** -0.5)

    ref = _reference(x, w_qkv, w_proj, head_dim=head_dim)

    # Default path: batch_tile picked automatically (-> 1 here, grid=(2,)).
    out = metaformer_attention(x, w_qkv, w_proj, head_dim=head_dim)
    out = jax.block_until_ready(out)
    assert out.shape == (B, dim, H, W)
    # Tolerance slightly loosened vs. exact f32 because the softmax normalization
    # uses the EUP approximate reciprocal (pl.reciprocal(..., approx=True)).
    assert jnp.allclose(out, ref, atol=1e-2, rtol=1e-2), float(jnp.max(jnp.abs(out - ref)))

    # Also exercise the multi-batch-per-grid-step (Bt > 1) path.
    out2 = metaformer_attention(x, w_qkv, w_proj, head_dim=head_dim, batch_tile=2)
    out2 = jax.block_until_ready(out2)
    assert jnp.allclose(out2, ref, atol=1e-2, rtol=1e-2), float(jnp.max(jnp.abs(out2 - ref)))

    print("KERNEL_OK")
</pallas_src>

<mosaic_0001>
module attributes {stable_mosaic.version = 11 : i64} {
  func.func @_attention_kernel(%arg0: i32, %arg1: memref<1x64x64xf32, #tpu.memory_space<vmem>>, %arg2: memref<2x64x32xf32, #tpu.memory_space<vmem>>, %arg3: memref<2x64x32xf32, #tpu.memory_space<vmem>>, %arg4: memref<2x64x32xf32, #tpu.memory_space<vmem>>, %arg5: memref<2x32x64xf32, #tpu.memory_space<vmem>>, %arg6: memref<1x64x64xf32, #tpu.memory_space<vmem>>) attributes {dimension_semantics = [#tpu.dimension_semantics<parallel>], iteration_bounds = array<i64: 2>, scalar_prefetch = 0 : i64, scratch_operands = 0 : i64, tpu.core_type = #tpu.core_type<tc>, window_params = [{transform_indices = @transform_0, window_bounds = array<i64: 1, 64, 64>}, {pipeline_mode = #tpu.pipeline_mode<synchronous>, transform_indices = @transform_1, window_bounds = array<i64: 2, 64, 32>}, {pipeline_mode = #tpu.pipeline_mode<synchronous>, transform_indices = @transform_2, window_bounds = array<i64: 2, 64, 32>}, {pipeline_mode = #tpu.pipeline_mode<synchronous>, transform_indices = @transform_3, window_bounds = array<i64: 2, 64, 32>}, {pipeline_mode = #tpu.pipeline_mode<synchronous>, transform_indices = @transform_4, window_bounds = array<i64: 2, 32, 64>}, {transform_indices = @transform_5, window_bounds = array<i64: 1, 64, 64>}]} {
    %c0 = arith.constant 0 : index
    %c0_0 = arith.constant 0 : index
    %c0_1 = arith.constant 0 : index
    %0 = vector.load %arg1[%c0, %c0_0, %c0_1] : memref<1x64x64xf32, #tpu.memory_space<vmem>>, vector<1x64x64xf32>
    %1 = vector.shape_cast %0 : vector<1x64x64xf32> to vector<64x64xf32>
    %cst = arith.constant 0.000000e+00 : f32
    %2 = vector.broadcast %cst : f32 to vector<64x64xf32>
    %c0_2 = arith.constant 0 : index
    %c0_3 = arith.constant 0 : index
    %c0_4 = arith.constant 0 : index
    %3 = vector.load %arg2[%c0_2, %c0_3, %c0_4] : memref<2x64x32xf32, #tpu.memory_space<vmem>>, vector<1x64x32xf32>
    %4 = vector.shape_cast %3 : vector<1x64x32xf32> to vector<64x32xf32>
    %cst_5 = arith.constant dense<0.000000e+00> : vector<64x32xf32>
    %5 = tpu.matmul %1, %4, %cst_5 {dimension_numbers = #tpu.dot_dimension_numbers<[1], [0], [0], [1], [0, 0, 1, 1], [], []>} : vector<64x64xf32>, vector<64x32xf32>, vector<64x32xf32> -> vector<64x32xf32>
    %c0_6 = arith.constant 0 : index
    %c0_7 = arith.constant 0 : index
    %c0_8 = arith.constant 0 : index
    %6 = vector.load %arg3[%c0_6, %c0_7, %c0_8] : memref<2x64x32xf32, #tpu.memory_space<vmem>>, vector<1x64x32xf32>
    %7 = vector.shape_cast %6 : vector<1x64x32xf32> to vector<64x32xf32>
    %cst_9 = arith.constant dense<0.000000e+00> : vector<64x32xf32>
    %8 = tpu.matmul %1, %7, %cst_9 {dimension_numbers = #tpu.dot_dimension_numbers<[1], [0], [0], [1], [0, 0, 1, 1], [], []>} : vector<64x64xf32>, vector<64x32xf32>, vector<64x32xf32> -> vector<64x32xf32>
    %c0_10 = arith.constant 0 : index
    %c0_11 = arith.constant 0 : index
    %c0_12 = arith.constant 0 : index
    %9 = vector.load %arg4[%c0_10, %c0_11, %c0_12] : memref<2x64x32xf32, #tpu.memory_space<vmem>>, vector<1x64x32xf32>
    %10 = vector.shape_cast %9 : vector<1x64x32xf32> to vector<64x32xf32>
    %cst_13 = arith.constant dense<0.000000e+00> : vector<64x32xf32>
    %11 = tpu.matmul %1, %10, %cst_13 {dimension_numbers = #tpu.dot_dimension_numbers<[1], [0], [0], [1], [0, 0, 1, 1], [], []>} : vector<64x64xf32>, vector<64x32xf32>, vector<64x32xf32> -> vector<64x32xf32>
    %12 = vector.shape_cast %5 : vector<64x32xf32> to vector<1x64x32xf32>
    %13 = vector.shape_cast %8 : vector<64x32xf32> to vector<1x64x32xf32>
    %14 = vector.shape_cast %11 : vector<64x32xf32> to vector<1x64x32xf32>
    "tpu.trace_start"() <{level = 10 : i32, message = "bqh,bkh->bqk"}> : () -> ()
    %cst_14 = arith.constant dense<0.000000e+00> : vector<1x64x64xf32>
    %15 = tpu.matmul %12, %13, %cst_14 {dimension_numbers = #tpu.dot_dimension_numbers<[2], [2], [1], [1], [0, 0, 0, 1, 1, 1], [0], [0]>} : vector<1x64x32xf32>, vector<1x64x32xf32>, vector<1x64x64xf32> -> vector<1x64x64xf32>
    "tpu.trace_stop"() : () -> ()
    %cst_15 = arith.constant dense<0xFF800000> : vector<1x64xf32>
    %16 = vector.multi_reduction <maximumf>, %15, %cst_15 [2] : vector<1x64x64xf32> to vector<1x64xf32>
    %17 = vector.shape_cast %16 : vector<1x64xf32> to vector<1x64x1xf32>
    %18 = vector.broadcast %17 : vector<1x64x1xf32> to vector<1x64x64xf32>
    %19 = arith.subf %15, %18 : vector<1x64x64xf32>
    %20 = math.exp %19 : vector<1x64x64xf32>
    %cst_16 = arith.constant dense<0.000000e+00> : vector<1x64xf32>
    %21 = vector.multi_reduction <add>, %20, %cst_16 [2] : vector<1x64x64xf32> to vector<1x64xf32>
    %22 = vector.shape_cast %21 : vector<1x64xf32> to vector<1x64x1xf32>
    "tpu.trace_start"() <{level = 10 : i32, message = "bqk,bkh->bqh"}> : () -> ()
    %cst_17 = arith.constant dense<0.000000e+00> : vector<1x64x32xf32>
    %23 = tpu.matmul %20, %14, %cst_17 {dimension_numbers = #tpu.dot_dimension_numbers<[2], [1], [1], [2], [0, 0, 0, 1, 1, 2], [0], [0]>} : vector<1x64x64xf32>, vector<1x64x32xf32>, vector<1x64x32xf32> -> vector<1x64x32xf32>
    "tpu.trace_stop"() : () -> ()
    %24 = tpu.reciprocal %22 {approx = true} : vector<1x64x1xf32> -> vector<1x64x1xf32>
    %25 = vector.broadcast %24 : vector<1x64x1xf32> to vector<1x64x32xf32>
    %26 = arith.mulf %23, %25 : vector<1x64x32xf32>
    %27 = vector.shape_cast %26 : vector<1x64x32xf32> to vector<64x32xf32>
    %c0_18 = arith.constant 0 : index
    %c0_19 = arith.constant 0 : index
    %c0_20 = arith.constant 0 : index
    %28 = vector.load %arg5[%c0_18, %c0_19, %c0_20] : memref<2x32x64xf32, #tpu.memory_space<vmem>>, vector<1x32x64xf32>
    %29 = vector.shape_cast %28 : vector<1x32x64xf32> to vector<32x64xf32>
    %cst_21 = arith.constant dense<0.000000e+00> : vector<64x64xf32>
    %30 = tpu.matmul %27, %29, %cst_21 {dimension_numbers = #tpu.dot_dimension_numbers<[1], [0], [0], [1], [0, 0, 1, 1], [], []>} : vector<64x32xf32>, vector<32x64xf32>, vector<64x64xf32> -> vector<64x64xf32>
    %31 = arith.addf %2, %30 : vector<64x64xf32>
    %c1 = arith.constant 1 : index
    %c0_22 = arith.constant 0 : index
    %c0_23 = arith.constant 0 : index
    %32 = vector.load %arg2[%c1, %c0_22, %c0_23] : memref<2x64x32xf32, #tpu.memory_space<vmem>>, vector<1x64x32xf32>
    %33 = vector.shape_cast %32 : vector<1x64x32xf32> to vector<64x32xf32>
    %cst_24 = arith.constant dense<0.000000e+00> : vector<64x32xf32>
    %34 = tpu.matmul %1, %33, %cst_24 {dimension_numbers = #tpu.dot_dimension_numbers<[1], [0], [0], [1], [0, 0, 1, 1], [], []>} : vector<64x64xf32>, vector<64x32xf32>, vector<64x32xf32> -> vector<64x32xf32>
    %c1_25 = arith.constant 1 : index
    %c0_26 = arith.constant 0 : index
    %c0_27 = arith.constant 0 : index
    %35 = vector.load %arg3[%c1_25, %c0_26, %c0_27] : memref<2x64x32xf32, #tpu.memory_space<vmem>>, vector<1x64x32xf32>
    %36 = vector.shape_cast %35 : vector<1x64x32xf32> to vector<64x32xf32>
    %cst_28 = arith.constant dense<0.000000e+00> : vector<64x32xf32>
    %37 = tpu.matmul %1, %36, %cst_28 {dimension_numbers = #tpu.dot_dimension_numbers<[1], [0], [0], [1], [0, 0, 1, 1], [], []>} : vector<64x64xf32>, vector<64x32xf32>, vector<64x32xf32> -> vector<64x32xf32>
    %c1_29 = arith.constant 1 : index
    %c0_30 = arith.constant 0 : index
    %c0_31 = arith.constant 0 : index
    %38 = vector.load %arg4[%c1_29, %c0_30, %c0_31] : memref<2x64x32xf32, #tpu.memory_space<vmem>>, vector<1x64x32xf32>
    %39 = vector.shape_cast %38 : vector<1x64x32xf32> to vector<64x32xf32>
    %cst_32 = arith.constant dense<0.000000e+00> : vector<64x32xf32>
    %40 = tpu.matmul %1, %39, %cst_32 {dimension_numbers = #tpu.dot_dimension_numbers<[1], [0], [0], [1], [0, 0, 1, 1], [], []>} : vector<64x64xf32>, vector<64x32xf32>, vector<64x32xf32> -> vector<64x32xf32>
    %41 = vector.shape_cast %34 : vector<64x32xf32> to vector<1x64x32xf32>
    %42 = vector.shape_cast %37 : vector<64x32xf32> to vector<1x64x32xf32>
    %43 = vector.shape_cast %40 : vector<64x32xf32> to vector<1x64x32xf32>
    "tpu.trace_start"() <{level = 10 : i32, message = "bqh,bkh->bqk"}> : () -> ()
    %cst_33 = arith.constant dense<0.000000e+00> : vector<1x64x64xf32>
    %44 = tpu.matmul %41, %42, %cst_33 {dimension_numbers = #tpu.dot_dimension_numbers<[2], [2], [1], [1], [0, 0, 0, 1, 1, 1], [0], [0]>} : vector<1x64x32xf32>, vector<1x64x32xf32>, vector<1x64x64xf32> -> vector<1x64x64xf32>
    "tpu.trace_stop"() : () -> ()
    %cst_34 = arith.constant dense<0xFF800000> : vector<1x64xf32>
    %45 = vector.multi_reduction <maximumf>, %44, %cst_34 [2] : vector<1x64x64xf32> to vector<1x64xf32>
    %46 = vector.shape_cast %45 : vector<1x64xf32> to vector<1x64x1xf32>
    %47 = vector.broadcast %46 : vector<1x64x1xf32> to vector<1x64x64xf32>
    %48 = arith.subf %44, %47 : vector<1x64x64xf32>
    %49 = math.exp %48 : vector<1x64x64xf32>
    %cst_35 = arith.constant dense<0.000000e+00> : vector<1x64xf32>
    %50 = vector.multi_reduction <add>, %49, %cst_35 [2] : vector<1x64x64xf32> to vector<1x64xf32>
    %51 = vector.shape_cast %50 : vector<1x64xf32> to vector<1x64x1xf32>
    "tpu.trace_start"() <{level = 10 : i32, message = "bqk,bkh->bqh"}> : () -> ()
    %cst_36 = arith.constant dense<0.000000e+00> : vector<1x64x32xf32>
    %52 = tpu.matmul %49, %43, %cst_36 {dimension_numbers = #tpu.dot_dimension_numbers<[2], [1], [1], [2], [0, 0, 0, 1, 1, 2], [0], [0]>} : vector<1x64x64xf32>, vector<1x64x32xf32>, vector<1x64x32xf32> -> vector<1x64x32xf32>
    "tpu.trace_stop"() : () -> ()
    %53 = tpu.reciprocal %51 {approx = true} : vector<1x64x1xf32> -> vector<1x64x1xf32>
    %54 = vector.broadcast %53 : vector<1x64x1xf32> to vector<1x64x32xf32>
    %55 = arith.mulf %52, %54 : vector<1x64x32xf32>
    %56 = vector.shape_cast %55 : vector<1x64x32xf32> to vector<64x32xf32>
    %c1_37 = arith.constant 1 : index
    %c0_38 = arith.constant 0 : index
    %c0_39 = arith.constant 0 : index
    %57 = vector.load %arg5[%c1_37, %c0_38, %c0_39] : memref<2x32x64xf32, #tpu.memory_space<vmem>>, vector<1x32x64xf32>
    %58 = vector.shape_cast %57 : vector<1x32x64xf32> to vector<32x64xf32>
    %cst_40 = arith.constant dense<0.000000e+00> : vector<64x64xf32>
    %59 = tpu.matmul %56, %58, %cst_40 {dimension_numbers = #tpu.dot_dimension_numbers<[1], [0], [0], [1], [0, 0, 1, 1], [], []>} : vector<64x32xf32>, vector<32x64xf32>, vector<64x64xf32> -> vector<64x64xf32>
    %60 = arith.addf %31, %59 : vector<64x64xf32>
    %61 = vector.shape_cast %60 : vector<64x64xf32> to vector<1x64x64xf32>
    %c0_41 = arith.constant 0 : index
    %c0_42 = arith.constant 0 : index
    %c0_43 = arith.constant 0 : index
    %62 = vector.load %arg6[%c0_41, %c0_42, %c0_43] : memref<1x64x64xf32, #tpu.memory_space<vmem>>, vector<1x64x64xf32>
    tpu.vector_store %arg6[%c0_41, %c0_42, %c0_43], %61 {strides = array<i32>} : memref<1x64x64xf32, #tpu.memory_space<vmem>>, vector<1x64x64xf32>,
    return
  }
  func.func @transform_0(%arg0: i32) -> (i32, i32, i32) {
    %c0_i32 = arith.constant 0 : i32
    %c0_i32_0 = arith.constant 0 : i32
    %c0_i32_1 = arith.constant 0 : i32
    return %arg0, %c0_i32, %c0_i32_0 : i32, i32, i32
  }
  func.func @transform_1(%arg0: i32) -> (i32, i32, i32) {
    %c0_i32 = arith.constant 0 : i32
    %c0_i32_0 = arith.constant 0 : i32
    %c0_i32_1 = arith.constant 0 : i32
    %c0_i32_2 = arith.constant 0 : i32
    return %c0_i32, %c0_i32_0, %c0_i32_1 : i32, i32, i32
  }
  func.func @transform_2(%arg0: i32) -> (i32, i32, i32) {
    %c0_i32 = arith.constant 0 : i32
    %c0_i32_0 = arith.constant 0 : i32
    %c0_i32_1 = arith.constant 0 : i32
    %c0_i32_2 = arith.constant 0 : i32
    return %c0_i32, %c0_i32_0, %c0_i32_1 : i32, i32, i32
  }
  func.func @transform_3(%arg0: i32) -> (i32, i32, i32) {
    %c0_i32 = arith.constant 0 : i32
    %c0_i32_0 = arith.constant 0 : i32
    %c0_i32_1 = arith.constant 0 : i32
    %c0_i32_2 = arith.constant 0 : i32
    return %c0_i32, %c0_i32_0, %c0_i32_1 : i32, i32, i32
  }
  func.func @transform_4(%arg0: i32) -> (i32, i32, i32) {
    %c0_i32 = arith.constant 0 : i32
    %c0_i32_0 = arith.constant 0 : i32
    %c0_i32_1 = arith.constant 0 : i32
    %c0_i32_2 = arith.constant 0 : i32
    return %c0_i32, %c0_i32_0, %c0_i32_1 : i32, i32, i32
  }
  func.func @transform_5(%arg0: i32) -> (i32, i32, i32) {
    %c0_i32 = arith.constant 0 : i32
    %c0_i32_0 = arith.constant 0 : i32
    %c0_i32_1 = arith.constant 0 : i32
    return %arg0, %c0_i32, %c0_i32_0 : i32, i32, i32
  }
}

</mosaic_0001>

<llo_original>
// kernel: tpu_custom_call.1
$region0: #{tpu_custom_call.1}
  #allocation0 [shape = 'u32[]', space=smem, size = 0x4, offset = 0x4, fixed_abs, tag = 'smem constant byte address 0x4 - core index']
  #allocation1 [shape = 'u32[72,128]{1,0:T(1,128)}', space=vmem, size = 0x9000, scoped, tag = 'internal scratch']
  %s0 = inlined_call_operand.vmem [shape: f32[2,64,64], index: 0, kind: input, shape index: {}]
  %s1 = inlined_call_operand.vmem [shape: f32[2,64,32], index: 1, kind: input, shape index: {}]
  %s2 = inlined_call_operand.vmem [shape: f32[2,64,32], index: 2, kind: input, shape index: {}]
  %s3 = inlined_call_operand.vmem [shape: f32[2,64,32], index: 3, kind: input, shape index: {}]
  %s4 = inlined_call_operand.vmem [shape: f32[2,32,64], index: 4, kind: input, shape index: {}]
  %s5 = inlined_call_operand.hbm [shape: f32[2,64,64], index: 5, kind: output, shape index: {}]
  %s6 = sld [smem:[#allocation0]]
  $region53: #{tpu_custom_call.1} parent=0
    _
  %s8 = ssub.s32 1, %s6
  %s9 = scalar_select 0, %s8, %s6
  $region1: #{tpu_custom_call.1} parent=0
    #allocation2 [shape = 'u8[65536]{0}', space=vmem, size = 0x10000, scoped, tag = 'output window, operand 0']
    #allocation3 [shape = 's32[2]{0}', space=sflag, size = 0x8, scoped, tag = 'scoped memory for tpu_custom_call.1']
    %10 = vsyncpa [#allocation3], 0
    %s11 = scalar_lea.sflag [#allocation3], 1
    %12 = vsyncpa %s11, 0
    loop: start=0, step=1, limit=4
    $region2: #{tpu_custom_call.1} parent=1 // loop_pre_header
      _
    $region3: #{tpu_custom_call.1} parent=1 // loop_header
      %s14 = sphi 0, %s18
      %p15 = scmp.ge.s32.totalorder %s14, 4
      %s24 = sphi 0, %s26
      %s27 = sphi 0, %s24
      %s28 = sphi 0, %s27
      %s44 = sphi 0, %s28
      %s48 = sphi 0, %s48
      %s50 = sphi 0, %s48
      %s51 = sphi 0, %s50
      %s65 = sphi 0, %s51
      %s69 = sphi 0, %s69
      %s71 = sphi 0, %s69
      %s72 = sphi 0, %s71
      %s86 = sphi 0, %s72
      %s90 = sphi 0, %s90
      %s92 = sphi 0, %s90
      %s93 = sphi 0, %s92
      %s107 = sphi 0, %s93
      %s111 = sphi 0, %s111
      %s113 = sphi 0, %s111
      %s114 = sphi 0, %s113
      %s128 = sphi 0, %s114
      %s134 = sphi 0, %s136
      %s137 = sphi 0, %s134
      %s138 = sphi 0, %s137
      %s154 = sphi 0, %s138
    $region4: #{tpu_custom_call.1} parent=1 // loop_header_branch
      %17 = sbr.rel (%p15) target = $region8
    $region5: #{tpu_custom_call.1} parent=1 // loop_body
      %s19 = ssub.s32 %s14, 1
      %s20 = ssub.s32 %s14, 2
      %s21 = sadd.s32 %s14, 1
      %s22 = ssub.s32 %s14, %s21
      %p23 = scmp.eq.s32.totalorder %s22, 0
      %s25 = sadd.s32 %s24, 1
      %s26 = scalar_select %p23, %s24, %s25
      %p29 = pneg %p23
      %p30 = scmp.eq.s32.totalorder %s14, 1
      %p31 = por %p29, %p30
      %p32 = scmp.ne.s32.totalorder %s24, %s27
      %p33 = scmp.eq.s32.totalorder %s14, 0
      %p34 = por %p32, %p33
      %p35 = scmp.ne.s32.totalorder %s24, %s27
      %p36 = scmp.eq.s32.totalorder %s19, 1
      %p37 = por %p35, %p36
      %p38 = scmp.ne.s32.totalorder %s27, %s28
      %p39 = scmp.eq.s32.totalorder %s19, 0
      %p40 = por %p38, %p39
      %p41 = scmp.ne.s32.totalorder %s27, %s28
      %p42 = scmp.eq.s32.totalorder %s20, 1
      %p43 = por %p41, %p42
      %p45 = scmp.ne.s32.totalorder %s28, %s44
      %p46 = scmp.eq.s32.totalorder %s20, 0
      %p47 = por %p45, %p46
      %s49 = sadd.s32 %s48, 1
      %p52 = scmp.eq.s32.totalorder %s14, 1
      %p53 = scmp.ne.s32.totalorder %s48, %s50
      %p54 = scmp.eq.s32.totalorder %s14, 0
      %p55 = por %p53, %p54
      %p56 = scmp.ne.s32.totalorder %s48, %s50
      %p57 = scmp.eq.s32.totalorder %s19, 1
      %p58 = por %p56, %p57
      %p59 = scmp.ne.s32.totalorder %s50, %s51
      %p60 = scmp.eq.s32.totalorder %s19, 0
      %p61 = por %p59, %p60
      %p62 = scmp.ne.s32.totalorder %s50, %s51
      %p63 = scmp.eq.s32.totalorder %s20, 1
      %p64 = por %p62, %p63
      %p66 = scmp.ne.s32.totalorder %s51, %s65
      %p67 = scmp.eq.s32.totalorder %s20, 0
      %p68 = por %p66, %p67
      %s70 = sadd.s32 %s69, 1
      %p73 = scmp.eq.s32.totalorder %s14, 1
      %p74 = scmp.ne.s32.totalorder %s69, %s71
      %p75 = scmp.eq.s32.totalorder %s14, 0
      %p76 = por %p74, %p75
      %p77 = scmp.ne.s32.totalorder %s69, %s71
      %p78 = scmp.eq.s32.totalorder %s19, 1
      %p79 = por %p77, %p78
      %p80 = scmp.ne.s32.totalorder %s71, %s72
      %p81 = scmp.eq.s32.totalorder %s19, 0
      %p82 = por %p80, %p81
      %p83 = scmp.ne.s32.totalorder %s71, %s72
      %p84 = scmp.eq.s32.totalorder %s20, 1
      %p85 = por %p83, %p84
      %p87 = scmp.ne.s32.totalorder %s72, %s86
      %p88 = scmp.eq.s32.totalorder %s20, 0
      %p89 = por %p87, %p88
      %s91 = sadd.s32 %s90, 1
      %p94 = scmp.eq.s32.totalorder %s14, 1
      %p95 = scmp.ne.s32.totalorder %s90, %s92
      %p96 = scmp.eq.s32.totalorder %s14, 0
      %p97 = por %p95, %p96
      %p98 = scmp.ne.s32.totalorder %s90, %s92
      %p99 = scmp.eq.s32.totalorder %s19, 1
      %p100 = por %p98, %p99
      %p101 = scmp.ne.s32.totalorder %s92, %s93
      %p102 = scmp.eq.s32.totalorder %s19, 0
      %p103 = por %p101, %p102
      %p104 = scmp.ne.s32.totalorder %s92, %s93
      %p105 = scmp.eq.s32.totalorder %s20, 1
      %p106 = por %p104, %p105
      %p108 = scmp.ne.s32.totalorder %s93, %s107
      %p109 = scmp.eq.s32.totalorder %s20, 0
      %p110 = por %p108, %p109
      %s112 = sadd.s32 %s111, 1
      %p115 = scmp.eq.s32.totalorder %s14, 1
      %p116 = scmp.ne.s32.totalorder %s111, %s113
      %p117 = scmp.eq.s32.totalorder %s14, 0
      %p118 = por %p116, %p117
      %p119 = scmp.ne.s32.totalorder %s111, %s113
      %p120 = scmp.eq.s32.totalorder %s19, 1
      %p121 = por %p119, %p120
      %p122 = scmp.ne.s32.totalorder %s113, %s114
      %p123 = scmp.eq.s32.totalorder %s19, 0
      %p124 = por %p122, %p123
      %p125 = scmp.ne.s32.totalorder %s113, %s114
      %p126 = scmp.eq.s32.totalorder %s20, 1
      %p127 = por %p125, %p126
      %p129 = scmp.ne.s32.totalorder %s114, %s128
      %p130 = scmp.eq.s32.totalorder %s20, 0
      %p131 = por %p129, %p130
      %s132 = ssub.s32 %s14, %s21
      %p133 = scmp.eq.s32.totalorder %s132, 0
      %s135 = sadd.s32 %s134, 1
      %s136 = scalar_select %p133, %s134, %s135
      %p139 = pneg %p133
      %p140 = scmp.eq.s32.totalorder %s14, 1
      %p141 = por %p139, %p140
      %p142 = scmp.ne.s32.totalorder %s134, %s137
      %p143 = scmp.eq.s32.totalorder %s14, 0
      %p144 = por %p142, %p143
      %p145 = scmp.ne.s32.totalorder %s134, %s137
      %p146 = scmp.eq.s32.totalorder %s19, 1
      %p147 = por %p145, %p146
      %p148 = scmp.ne.s32.totalorder %s137, %s138
      %p149 = scmp.eq.s32.totalorder %s19, 0
      %p150 = por %p148, %p149
      %p151 = scmp.ne.s32.totalorder %s137, %s138
      %p152 = scmp.eq.s32.totalorder %s20, 1
      %p153 = por %p151, %p152
      %p155 = scmp.ne.s32.totalorder %s138, %s154
      %p156 = scmp.eq.s32.totalorder %s20, 0
      %p157 = por %p155, %p156
      %p158 = scmp.le.s32.totalorder 1, %s14
      %p159 = scmp.lt.s32.totalorder %s14, 3
      %p160 = pnand %p158, %p159
      %p161 = pneg %p160
      // Predicated region
      $region9: #{tpu_custom_call.1} parent=5 // pred_check
        _
      $region10: #{tpu_custom_call.1} parent=5 // pred_check_branch
        %163 = sbr.rel (%p160) target = $region12
      $region11: #{tpu_custom_call.1} parent=5 // pred_region
        %s164 = ssub.s32 %s14, 1
        // Predicated region
        $region13: #{tpu_custom_call.1} parent=11 // pred_check
          %p165 = pneg %p61
        $region14: #{tpu_custom_call.1} parent=11 // pred_check_branch
          %167 = sbr.rel (%p165) target = $region16
        $region15: #{tpu_custom_call.1} parent=11 // pred_region
          _
        $region16: #{tpu_custom_call.1} parent=11 // pred_fallthru
          _
        // Predicated region
        $region17: #{tpu_custom_call.1} parent=11 // pred_check
          %p168 = pneg %p82
        $region18: #{tpu_custom_call.1} parent=11 // pred_check_branch
          %170 = sbr.rel (%p168) target = $region20
        $region19: #{tpu_custom_call.1} parent=11 // pred_region
          _
        $region20: #{tpu_custom_call.1} parent=11 // pred_fallthru
          _
        // Predicated region
        $region21: #{tpu_custom_call.1} parent=11 // pred_check
          %p171 = pneg %p103
        $region22: #{tpu_custom_call.1} parent=11 // pred_check_branch
          %173 = sbr.rel (%p171) target = $region24
        $region23: #{tpu_custom_call.1} parent=11 // pred_region
          _
        $region24: #{tpu_custom_call.1} parent=11 // pred_fallthru
          _
        // Predicated region
        $region25: #{tpu_custom_call.1} parent=11 // pred_check
          %p174 = pneg %p124
        $region26: #{tpu_custom_call.1} parent=11 // pred_check_branch
          %176 = sbr.rel (%p174) target = $region28
        $region27: #{tpu_custom_call.1} parent=11 // pred_region
          _
        $region28: #{tpu_custom_call.1} parent=11 // pred_fallthru
          _
      $region12: #{tpu_custom_call.1} parent=5 // pred_fallthru
        _
      %p177 = scmp.lt.s32.totalorder %s14, 2
      // Predicated region
      $region29: #{tpu_custom_call.1} parent=5 // pred_check
        %p178 = pneg %p177
      $region30: #{tpu_custom_call.1} parent=5 // pred_check_branch
        %180 = sbr.rel (%p178) target = $region32
      $region31: #{tpu_custom_call.1} parent=5 // pred_region
        // Predicated region
        $region33: #{tpu_custom_call.1} parent=31 // pred_check
          %p181 = pneg %p34
        $region34: #{tpu_custom_call.1} parent=31 // pred_check_branch
          %183 = sbr.rel (%p181) target = $region36
        $region35: #{tpu_custom_call.1} parent=31 // pred_region
          %p184 = scmp.lt.s32.totalorder %s14, 1
          %s185 = scalar_select %p184, %s14, 1
          %s186 = smul.addr %s185, 8
          %s187 = smul.addr %s186, 8
          %s188 = scalar_lea.vmem %s0, %s187
        $region36: #{tpu_custom_call.1} parent=31 // pred_fallthru
          _
      $region32: #{tpu_custom_call.1} parent=5 // pred_fallthru
        _
      %p189 = scmp.le.s32.totalorder 1, %s14
      %p190 = scmp.lt.s32.totalorder %s14, 3
      %p191 = pnand %p189, %p190
      %p192 = pneg %p191
      // Predicated region
      $region37: #{tpu_custom_call.1} parent=5 // pred_check
        _
      $region38: #{tpu_custom_call.1} parent=5 // pred_check_branch
        %194 = sbr.rel (%p191) target = $region40
      $region39: #{tpu_custom_call.1} parent=5 // pred_region
        %s195 = ssub.s32 %s14, 1
        %p196 = scmp.lt.s32.totalorder %s19, 1
        %s197 = scalar_select %p196, %s19, 1
        %s198 = smul.addr %s197, 8
        %s199 = smul.addr %s198, 8
        %s200 = scalar_lea.vmem %s0, %s199
        %p201 = pneg %p40
        %p202 = pneg %p37
        %p203 = pneg %p61
        %p204 = pneg %p58
        %p205 = pneg %p82
        %p206 = pneg %p79
        %p207 = pneg %p103
        %p208 = pneg %p100
        %p209 = pneg %p124
        %p210 = pneg %p121
        %p211 = pneg %p150
        %p212 = pneg %p147
        %s213 = sand.u32 %s137, 1
        %s214 = scalar_lea.sflag [#allocation3], %s213
        %s215 = sand.u32 %s137, 1
        %s216 = smul.addr %s215, 64
        %s217 = scalar_lea.vmem [#allocation2], %s216
        %p218 = scmp.lt.s32.totalorder %s19, 1
        %s219 = scalar_select %p218, %s19, 1
        %s220 = smul.addr %s219, 8
        %s221 = smul.addr %s220, 8
        %s222 = scalar_lea.vmem %s0, %s221
        %v223 = vld [vmem:[%s222] sm:$0xff]
        %v224 = vld [vmem:[%s222 + $0x8] sm:$0xff]
        %v225 = vld [vmem:[%s222 + $0x10] sm:$0xff]
        %v226 = vld [vmem:[%s222 + $0x18] sm:$0xff]
        %v227 = vld [vmem:[%s222 + $0x20] sm:$0xff]
        %v228 = vld [vmem:[%s222 + $0x28] sm:$0xff]
        %v229 = vld [vmem:[%s222 + $0x30] sm:$0xff]
        %v230 = vld [vmem:[%s222 + $0x38] sm:$0xff]
        %v231 = vld [vmem:[%s1] sm:$0xff]
        %v232 = vld [vmem:[%s1 + $0x8] sm:$0xff]
        %v233 = vld [vmem:[%s1 + $0x10] sm:$0xff]
        %v234 = vld [vmem:[%s1 + $0x18] sm:$0xff]
        %v235 = vld [vmem:[%s1 + $0x20] sm:$0xff]
        %v236 = vld [vmem:[%s1 + $0x28] sm:$0xff]
        %v237 = vld [vmem:[%s1 + $0x30] sm:$0xff]
        %v238 = vld [vmem:[%s1 + $0x38] sm:$0xff]
        %vm239 = vcmask 523264
        %v241 = vsel %vm239, %v223, 0
        %v244 = vsel %vm239, %v224, 0
        %v247 = vsel %vm239, %v225, 0
        %v250 = vsel %vm239, %v226, 0
        %v253 = vsel %vm239, %v227, 0
        %v256 = vsel %vm239, %v228, 0
        %v259 = vsel %vm239, %v229, 0
        %v262 = vsel %vm239, %v230, 0
        %264 = vmatpush.msra.mxu0 0.0
        %265 = vmatpush.msra.mxu0 0.0
        %266 = vmatpush.msra.mxu0 0.0
        %267 = vmatpush.msra.mxu0 0.0
        %268 = vmatpush.msra.mxu0 0.0
        %269 = vmatpush.msra.mxu0 0.0
        %270 = vmatpush.msra.mxu0 0.0
        %271 = vmatpush.msra.mxu0 0.0
        %272 = vmatpush.msra.mxu0 %v238
        %273 = vmatpush.msra.mxu0 %v237
        %274 = vmatpush.msra.mxu0 %v236
        %275 = vmatpush.msra.mxu0 %v235
        %276 = vmatpush.msra.mxu0 %v234
        %277 = vmatpush.msra.mxu0 %v233
        %278 = vmatpush.msra.mxu0 %v232
        %279 = vmatpush.msra.mxu0 %v231
        %280 = vmatmul.f32.gmra.mxu0 %v241
        %v281 = vpop.f32.mrf.mxu0
        %v282 = vadd.f32 0.0, %v281
        %283 = vmatmul.f32.gmra.mxu0 %v244
        %v284 = vpop.f32.mrf.mxu0
        %v285 = vadd.f32 0.0, %v284
        %286 = vmatmul.f32.gmra.mxu0 %v247
        %v287 = vpop.f32.mrf.mxu0
        %v288 = vadd.f32 0.0, %v287
        %289 = vmatmul.f32.gmra.mxu0 %v250
        %v290 = vpop.f32.mrf.mxu0
        %v291 = vadd.f32 0.0, %v290
        %292 = vmatmul.f32.gmra.mxu0 %v253
        %v293 = vpop.f32.mrf.mxu0
        %v294 = vadd.f32 0.0, %v293
        %295 = vmatmul.f32.gmra.mxu0 %v256
        %v296 = vpop.f32.mrf.mxu0
        %v297 = vadd.f32 0.0, %v296
        %298 = vmatmul.f32.gmra.mxu0 %v259
        %v299 = vpop.f32.mrf.mxu0
        %v300 = vadd.f32 0.0, %v299
        %301 = vmatmul.f32.gmra.mxu0 %v262
        %v302 = vpop.f32.mrf.mxu0
        %v303 = vadd.f32 0.0, %v302
        %304 = vdwg.mxu0
        %v305 = vld [vmem:[%s2] sm:$0xff]
        %v306 = vld [vmem:[%s2 + $0x8] sm:$0xff]
        %v307 = vld [vmem:[%s2 + $0x10] sm:$0xff]
        %v308 = vld [vmem:[%s2 + $0x18] sm:$0xff]
        %v309 = vld [vmem:[%s2 + $0x20] sm:$0xff]
        %v310 = vld [vmem:[%s2 + $0x28] sm:$0xff]
        %v311 = vld [vmem:[%s2 + $0x30] sm:$0xff]
        %v312 = vld [vmem:[%s2 + $0x38] sm:$0xff]
        %313 = vmatpush.msra.mxu0 0.0
        %314 = vmatpush.msra.mxu0 0.0
        %315 = vmatpush.msra.mxu0 0.0
        %316 = vmatpush.msra.mxu0 0.0
        %317 = vmatpush.msra.mxu0 0.0
        %318 = vmatpush.msra.mxu0 0.0
        %319 = vmatpush.msra.mxu0 0.0
        %320 = vmatpush.msra.mxu0 0.0
        %321 = vmatpush.msra.mxu0 %v312
        %322 = vmatpush.msra.mxu0 %v311
        %323 = vmatpush.msra.mxu0 %v310
        %324 = vmatpush.msra.mxu0 %v309
        %325 = vmatpush.msra.mxu0 %v308
        %326 = vmatpush.msra.mxu0 %v307
        %327 = vmatpush.msra.mxu0 %v306
        %328 = vmatpush.msra.mxu0 %v305
        %329 = vmatmul.f32.gmra.mxu0 %v241
        %v330 = vpop.f32.mrf.mxu0
        %v331 = vadd.f32 0.0, %v330
        %332 = vmatmul.f32.gmra.mxu0 %v244
        %v333 = vpop.f32.mrf.mxu0
        %v334 = vadd.f32 0.0, %v333
        %335 = vmatmul.f32.gmra.mxu0 %v247
        %v336 = vpop.f32.mrf.mxu0
        %v337 = vadd.f32 0.0, %v336
        %338 = vmatmul.f32.gmra.mxu0 %v250
        %v339 = vpop.f32.mrf.mxu0
        %v340 = vadd.f32 0.0, %v339
        %341 = vmatmul.f32.gmra.mxu0 %v253
        %v342 = vpop.f32.mrf.mxu0
        %v343 = vadd.f32 0.0, %v342
        %344 = vmatmul.f32.gmra.mxu0 %v256
        %v345 = vpop.f32.mrf.mxu0
        %v346 = vadd.f32 0.0, %v345
        %347 = vmatmul.f32.gmra.mxu0 %v259
        %v348 = vpop.f32.mrf.mxu0
        %v349 = vadd.f32 0.0, %v348
        %350 = vmatmul.f32.gmra.mxu0 %v262
        %v351 = vpop.f32.mrf.mxu0
        %v352 = vadd.f32 0.0, %v351
        %353 = vdwg.mxu0
        %v354 = vld [vmem:[%s3] sm:$0xff]
        %v355 = vld [vmem:[%s3 + $0x8] sm:$0xff]
        %v356 = vld [vmem:[%s3 + $0x10] sm:$0xff]
        %v357 = vld [vmem:[%s3 + $0x18] sm:$0xff]
        %v358 = vld [vmem:[%s3 + $0x20] sm:$0xff]
        %v359 = vld [vmem:[%s3 + $0x28] sm:$0xff]
        %v360 = vld [vmem:[%s3 + $0x30] sm:$0xff]
        %v361 = vld [vmem:[%s3 + $0x38] sm:$0xff]
        %362 = vmatpush.msra.mxu0 0.0
        %363 = vmatpush.msra.mxu0 0.0
        %364 = vmatpush.msra.mxu0 0.0
        %365 = vmatpush.msra.mxu0 0.0
        %366 = vmatpush.msra.mxu0 0.0
        %367 = vmatpush.msra.mxu0 0.0
        %368 = vmatpush.msra.mxu0 0.0
        %369 = vmatpush.msra.mxu0 0.0
        %370 = vmatpush.msra.mxu0 %v361
        %371 = vmatpush.msra.mxu0 %v360
        %372 = vmatpush.msra.mxu0 %v359
        %373 = vmatpush.msra.mxu0 %v358
        %374 = vmatpush.msra.mxu0 %v357
        %375 = vmatpush.msra.mxu0 %v356
        %376 = vmatpush.msra.mxu0 %v355
        %377 = vmatpush.msra.mxu0 %v354
        %378 = vmatmul.f32.gmra.mxu0 %v241
        %v379 = vpop.f32.mrf.mxu0
        %v380 = vadd.f32 0.0, %v379
        %381 = vmatmul.f32.gmra.mxu0 %v244
        %v382 = vpop.f32.mrf.mxu0
        %v383 = vadd.f32 0.0, %v382
        %384 = vmatmul.f32.gmra.mxu0 %v247
        %v385 = vpop.f32.mrf.mxu0
        %v386 = vadd.f32 0.0, %v385
        %387 = vmatmul.f32.gmra.mxu0 %v250
        %v388 = vpop.f32.mrf.mxu0
        %v389 = vadd.f32 0.0, %v388
        %390 = vmatmul.f32.gmra.mxu0 %v253
        %v391 = vpop.f32.mrf.mxu0
        %v392 = vadd.f32 0.0, %v391
        %393 = vmatmul.f32.gmra.mxu0 %v256
        %v394 = vpop.f32.mrf.mxu0
        %v395 = vadd.f32 0.0, %v394
        %396 = vmatmul.f32.gmra.mxu0 %v259
        %v397 = vpop.f32.mrf.mxu0
        %v398 = vadd.f32 0.0, %v397
        %399 = vmatmul.f32.gmra.mxu0 %v262
        %v400 = vpop.f32.mrf.mxu0
        %v401 = vadd.f32 0.0, %v400
        %402 = vdwg.mxu0
        %vm403 = vcmask 261120
        %v405 = vsel %vm403, %v282, 0
        %v408 = vsel %vm403, %v285, 0
        %v411 = vsel %vm403, %v288, 0
        %v414 = vsel %vm403, %v291, 0
        %v417 = vsel %vm403, %v294, 0
        %v420 = vsel %vm403, %v297, 0
        %v423 = vsel %vm403, %v300, 0
        %v426 = vsel %vm403, %v303, 0
        %v429 = vsel %vm403, %v331, 0
        %v432 = vsel %vm403, %v334, 0
        %v435 = vsel %vm403, %v337, 0
        %v438 = vsel %vm403, %v340, 0
        %v441 = vsel %vm403, %v343, 0
        %v444 = vsel %vm403, %v346, 0
        %v447 = vsel %vm403, %v349, 0
        %v450 = vsel %vm403, %v352, 0
        %452 = vmatpush.xpose.msra.mxu0 0.0
        %453 = vmatpush.xpose.msra.mxu0 0.0
        %454 = vmatpush.xpose.msra.mxu0 0.0
        %455 = vmatpush.xpose.msra.mxu0 0.0
        %456 = vmatpush.xpose.msra.mxu0 0.0
        %457 = vmatpush.xpose.msra.mxu0 0.0
        %458 = vmatpush.xpose.msra.mxu0 0.0
        %459 = vmatpush.xpose.msra.mxu0 0.0
        %460 = vmatpush.xpose.msra.mxu0 %v450
        %461 = vmatpush.xpose.msra.mxu0 %v447
        %462 = vmatpush.xpose.msra.mxu0 %v444
        %463 = vmatpush.xpose.msra.mxu0 %v441
        %464 = vmatpush.xpose.msra.mxu0 %v438
        %465 = vmatpush.xpose.msra.mxu0 %v435
        %466 = vmatpush.xpose.msra.mxu0 %v432
        %467 = vmatpush.xpose.msra.mxu0 %v429
        %468 = vmatmul.f32.gmra.mxu0 %v405
        %v469 = vpop.f32.mrf.mxu0
        %v470 = vadd.f32 0.0, %v469
        %471 = vmatmul.f32.gmra.mxu0 %v408
        %v472 = vpop.f32.mrf.mxu0
        %v473 = vadd.f32 0.0, %v472
        %474 = vmatmul.f32.gmra.mxu0 %v411
        %v475 = vpop.f32.mrf.mxu0
        %v476 = vadd.f32 0.0, %v475
        %477 = vmatmul.f32.gmra.mxu0 %v414
        %v478 = vpop.f32.mrf.mxu0
        %v479 = vadd.f32 0.0, %v478
        %480 = vmatmul.f32.gmra.mxu0 %v417
        %v481 = vpop.f32.mrf.mxu0
        %v482 = vadd.f32 0.0, %v481
        %483 = vmatmul.f32.gmra.mxu0 %v420
        %v484 = vpop.f32.mrf.mxu0
        %v485 = vadd.f32 0.0, %v484
        %486 = vmatmul.f32.gmra.mxu0 %v423
        %v487 = vpop.f32.mrf.mxu0
        %v488 = vadd.f32 0.0, %v487
        %489 = vmatmul.f32.gmra.mxu0 %v426
        %v490 = vpop.f32.mrf.mxu0
        %v491 = vadd.f32 0.0, %v490
        %492 = vdwg.mxu0
        %v493 = vsel %vm239, %v470, -inf
        %494 = vmax.xlane.f32.xlu0 %v493
        %v495 = vpop.xlane.xlu0 %494
        %v496 = vsel %vm239, %v473, -inf
        %497 = vmax.xlane.f32.xlu0 %v496
        %v498 = vpop.xlane.xlu0 %497
        %v499 = vsel %vm239, %v476, -inf
        %500 = vmax.xlane.f32.xlu0 %v499
        %v501 = vpop.xlane.xlu0 %500
        %v502 = vsel %vm239, %v479, -inf
        %503 = vmax.xlane.f32.xlu0 %v502
        %v504 = vpop.xlane.xlu0 %503
        %v505 = vsel %vm239, %v482, -inf
        %506 = vmax.xlane.f32.xlu0 %v505
        %v507 = vpop.xlane.xlu0 %506
        %v508 = vsel %vm239, %v485, -inf
        %509 = vmax.xlane.f32.xlu0 %v508
        %v510 = vpop.xlane.xlu0 %509
        %v511 = vsel %vm239, %v488, -inf
        %512 = vmax.xlane.f32.xlu0 %v511
        %v513 = vpop.xlane.xlu0 %512
        %v514 = vsel %vm239, %v491, -inf
        %515 = vmax.xlane.f32.xlu0 %v514
        %v516 = vpop.xlane.xlu0 %515
        %v517 = vsub.f32 %v470, %v495
        %v518 = vsub.f32 %v473, %v498
        %v519 = vsub.f32 %v476, %v501
        %v520 = vsub.f32 %v479, %v504
        %v521 = vsub.f32 %v482, %v507
        %v522 = vsub.f32 %v485, %v510
        %v523 = vsub.f32 %v488, %v513
        %v524 = vsub.f32 %v491, %v516
        %v525 = vmul.f32 %v517, 1.442695
        %v526 = vpow.pop %v525
        %v527 = vmul.f32 %v518, 1.442695
        %v528 = vpow.pop %v527
        %v529 = vmul.f32 %v519, 1.442695
        %v530 = vpow.pop %v529
        %v531 = vmul.f32 %v520, 1.442695
        %v532 = vpow.pop %v531
        %v533 = vmul.f32 %v521, 1.442695
        %v534 = vpow.pop %v533
        %v535 = vmul.f32 %v522, 1.442695
        %v536 = vpow.pop %v535
        %v537 = vmul.f32 %v523, 1.442695
        %v538 = vpow.pop %v537
        %v539 = vmul.f32 %v524, 1.442695
        %v540 = vpow.pop %v539
        %v541 = vsel %vm239, %v526, 0.0
        %542 = vadd.xlane.f32.xlu0 %v541
        %v543 = vpop.xlane.xlu0 %542
        %v544 = vsel %vm239, %v528, 0.0
        %545 = vadd.xlane.f32.xlu0 %v544
        %v546 = vpop.xlane.xlu0 %545
        %v547 = vsel %vm239, %v530, 0.0
        %548 = vadd.xlane.f32.xlu0 %v547
        %v549 = vpop.xlane.xlu0 %548
        %v550 = vsel %vm239, %v532, 0.0
        %551 = vadd.xlane.f32.xlu0 %v550
        %v552 = vpop.xlane.xlu0 %551
        %v553 = vsel %vm239, %v534, 0.0
        %554 = vadd.xlane.f32.xlu0 %v553
        %v555 = vpop.xlane.xlu0 %554
        %v556 = vsel %vm239, %v536, 0.0
        %557 = vadd.xlane.f32.xlu0 %v556
        %v558 = vpop.xlane.xlu0 %557
        %v559 = vsel %vm239, %v538, 0.0
        %560 = vadd.xlane.f32.xlu0 %v559
        %v561 = vpop.xlane.xlu0 %560
        %v562 = vsel %vm239, %v540, 0.0
        %563 = vadd.xlane.f32.xlu0 %v562
        %v564 = vpop.xlane.xlu0 %563
        %v566 = vsel %vm239, %v526, 0
        %v569 = vsel %vm239, %v528, 0
        %v572 = vsel %vm239, %v530, 0
        %v575 = vsel %vm239, %v532, 0
        %v578 = vsel %vm239, %v534, 0
        %v581 = vsel %vm239, %v536, 0
        %v584 = vsel %vm239, %v538, 0
        %v587 = vsel %vm239, %v540, 0
        %589 = vmatpush.msra.mxu0 0.0
        %590 = vmatpush.msra.mxu0 0.0
        %591 = vmatpush.msra.mxu0 0.0
        %592 = vmatpush.msra.mxu0 0.0
        %593 = vmatpush.msra.mxu0 0.0
        %594 = vmatpush.msra.mxu0 0.0
        %595 = vmatpush.msra.mxu0 0.0
        %596 = vmatpush.msra.mxu0 0.0
        %597 = vmatpush.msra.mxu0 %v401
        %598 = vmatpush.msra.mxu0 %v398
        %599 = vmatpush.msra.mxu0 %v395
        %600 = vmatpush.msra.mxu0 %v392
        %601 = vmatpush.msra.mxu0 %v389
        %602 = vmatpush.msra.mxu0 %v386
        %603 = vmatpush.msra.mxu0 %v383
        %604 = vmatpush.msra.mxu0 %v380
        %605 = vmatmul.f32.gmra.mxu0 %v566
        %v606 = vpop.f32.mrf.mxu0
        %v607 = vadd.f32 0.0, %v606
        %608 = vmatmul.f32.gmra.mxu0 %v569
        %v609 = vpop.f32.mrf.mxu0
        %v610 = vadd.f32 0.0, %v609
        %611 = vmatmul.f32.gmra.mxu0 %v572
        %v612 = vpop.f32.mrf.mxu0
        %v613 = vadd.f32 0.0, %v612
        %614 = vmatmul.f32.gmra.mxu0 %v575
        %v615 = vpop.f32.mrf.mxu0
        %v616 = vadd.f32 0.0, %v615
        %617 = vmatmul.f32.gmra.mxu0 %v578
        %v618 = vpop.f32.mrf.mxu0
        %v619 = vadd.f32 0.0, %v618
        %620 = vmatmul.f32.gmra.mxu0 %v581
        %v621 = vpop.f32.mrf.mxu0
        %v622 = vadd.f32 0.0, %v621
        %623 = vmatmul.f32.gmra.mxu0 %v584
        %v624 = vpop.f32.mrf.mxu0
        %v625 = vadd.f32 0.0, %v624
        %626 = vmatmul.f32.gmra.mxu0 %v587
        %v627 = vpop.f32.mrf.mxu0
        %v628 = vadd.f32 0.0, %v627
        %629 = vdwg.mxu0
        %v630 = vrcp.pop %v543
        %v631 = vrcp.pop %v546
        %v632 = vrcp.pop %v549
        %v633 = vrcp.pop %v552
        %v634 = vrcp.pop %v555
        %v635 = vrcp.pop %v558
        %v636 = vrcp.pop %v561
        %v637 = vrcp.pop %v564
        %v638 = vmul.f32 %v607, %v630
        %v639 = vmul.f32 %v610, %v631
        %v640 = vmul.f32 %v613, %v632
        %v641 = vmul.f32 %v616, %v633
        %v642 = vmul.f32 %v619, %v634
        %v643 = vmul.f32 %v622, %v635
        %v644 = vmul.f32 %v625, %v636
        %v645 = vmul.f32 %v628, %v637
        %v646 = vld [vmem:[%s4] sm:$0xff]
        %v647 = vld [vmem:[%s4 + $0x8] sm:$0xff]
        %v648 = vld [vmem:[%s4 + $0x10] sm:$0xff]
        %v649 = vld [vmem:[%s4 + $0x18] sm:$0xff]
        %s650 = scalar_lea.vmem %s1, 64
        %v651 = vld [vmem:[%s650] sm:$0xff]
        %v652 = vld [vmem:[%s650 + $0x8] sm:$0xff]
        %v653 = vld [vmem:[%s650 + $0x10] sm:$0xff]
        %v654 = vld [vmem:[%s650 + $0x18] sm:$0xff]
        %v655 = vld [vmem:[%s650 + $0x20] sm:$0xff]
        %v656 = vld [vmem:[%s650 + $0x28] sm:$0xff]
        %v657 = vld [vmem:[%s650 + $0x30] sm:$0xff]
        %v658 = vld [vmem:[%s650 + $0x38] sm:$0xff]
        %659 = vmatpush.msra.mxu0 0.0
        %660 = vmatpush.msra.mxu0 0.0
        %661 = vmatpush.msra.mxu0 0.0
        %662 = vmatpush.msra.mxu0 0.0
        %663 = vmatpush.msra.mxu0 0.0
        %664 = vmatpush.msra.mxu0 0.0
        %665 = vmatpush.msra.mxu0 0.0
        %666 = vmatpush.msra.mxu0 0.0
        %667 = vmatpush.msra.mxu0 %v658
        %668 = vmatpush.msra.mxu0 %v657
        %669 = vmatpush.msra.mxu0 %v656
        %670 = vmatpush.msra.mxu0 %v655
        %671 = vmatpush.msra.mxu0 %v654
        %672 = vmatpush.msra.mxu0 %v653
        %673 = vmatpush.msra.mxu0 %v652
        %674 = vmatpush.msra.mxu0 %v651
        %675 = vmatmul.f32.gmra.mxu0 %v241
        %v676 = vpop.f32.mrf.mxu0
        %v677 = vadd.f32 0.0, %v676
        %678 = vmatmul.f32.gmra.mxu0 %v244
        %v679 = vpop.f32.mrf.mxu0
        %v680 = vadd.f32 0.0, %v679
        %681 = vmatmul.f32.gmra.mxu0 %v247
        %v682 = vpop.f32.mrf.mxu0
        %v683 = vadd.f32 0.0, %v682
        %684 = vmatmul.f32.gmra.mxu0 %v250
        %v685 = vpop.f32.mrf.mxu0
        %v686 = vadd.f32 0.0, %v685
        %687 = vmatmul.f32.gmra.mxu0 %v253
        %v688 = vpop.f32.mrf.mxu0
        %v689 = vadd.f32 0.0, %v688
        %690 = vmatmul.f32.gmra.mxu0 %v256
        %v691 = vpop.f32.mrf.mxu0
        %v692 = vadd.f32 0.0, %v691
        %693 = vmatmul.f32.gmra.mxu0 %v259
        %v694 = vpop.f32.mrf.mxu0
        %v695 = vadd.f32 0.0, %v694
        %696 = vmatmul.f32.gmra.mxu0 %v262
        %v697 = vpop.f32.mrf.mxu0
        %v698 = vadd.f32 0.0, %v697
        %699 = vdwg.mxu0
        %s700 = scalar_lea.vmem %s2, 64
        %v701 = vld [vmem:[%s700] sm:$0xff]
        %v702 = vld [vmem:[%s700 + $0x8] sm:$0xff]
        %v703 = vld [vmem:[%s700 + $0x10] sm:$0xff]
        %v704 = vld [vmem:[%s700 + $0x18] sm:$0xff]
        %v705 = vld [vmem:[%s700 + $0x20] sm:$0xff]
        %v706 = vld [vmem:[%s700 + $0x28] sm:$0xff]
        %v707 = vld [vmem:[%s700 + $0x30] sm:$0xff]
        %v708 = vld [vmem:[%s700 + $0x38] sm:$0xff]
        %709 = vmatpush.msra.mxu0 0.0
        %710 = vmatpush.msra.mxu0 0.0
        %711 = vmatpush.msra.mxu0 0.0
        %712 = vmatpush.msra.mxu0 0.0
        %713 = vmatpush.msra.mxu0 0.0
        %714 = vmatpush.msra.mxu0 0.0
        %715 = vmatpush.msra.mxu0 0.0
        %716 = vmatpush.msra.mxu0 0.0
        %717 = vmatpush.msra.mxu0 %v708
        %718 = vmatpush.msra.mxu0 %v707
        %719 = vmatpush.msra.mxu0 %v706
        %720 = vmatpush.msra.mxu0 %v705
        %721 = vmatpush.msra.mxu0 %v704
        %722 = vmatpush.msra.mxu0 %v703
        %723 = vmatpush.msra.mxu0 %v702
        %724 = vmatpush.msra.mxu0 %v701
        %725 = vmatmul.f32.gmra.mxu0 %v241
        %v726 = vpop.f32.mrf.mxu0
        %v727 = vadd.f32 0.0, %v726
        %728 = vmatmul.f32.gmra.mxu0 %v244
        %v729 = vpop.f32.mrf.mxu0
        %v730 = vadd.f32 0.0, %v729
        %731 = vmatmul.f32.gmra.mxu0 %v247
        %v732 = vpop.f32.mrf.mxu0
        %v733 = vadd.f32 0.0, %v732
        %734 = vmatmul.f32.gmra.mxu0 %v250
        %v735 = vpop.f32.mrf.mxu0
        %v736 = vadd.f32 0.0, %v735
        %737 = vmatmul.f32.gmra.mxu0 %v253
        %v738 = vpop.f32.mrf.mxu0
        %v739 = vadd.f32 0.0, %v738
        %740 = vmatmul.f32.gmra.mxu0 %v256
        %v741 = vpop.f32.mrf.mxu0
        %v742 = vadd.f32 0.0, %v741
        %743 = vmatmul.f32.gmra.mxu0 %v259
        %v744 = vpop.f32.mrf.mxu0
        %v745 = vadd.f32 0.0, %v744
        %746 = vmatmul.f32.gmra.mxu0 %v262
        %v747 = vpop.f32.mrf.mxu0
        %v748 = vadd.f32 0.0, %v747
        %749 = vdwg.mxu0
        %s750 = scalar_lea.vmem %s3, 64
        %v751 = vld [vmem:[%s750] sm:$0xff]
        %v752 = vld [vmem:[%s750 + $0x8] sm:$0xff]
        %v753 = vld [vmem:[%s750 + $0x10] sm:$0xff]
        %v754 = vld [vmem:[%s750 + $0x18] sm:$0xff]
        %v755 = vld [vmem:[%s750 + $0x20] sm:$0xff]
        %v756 = vld [vmem:[%s750 + $0x28] sm:$0xff]
        %v757 = vld [vmem:[%s750 + $0x30] sm:$0xff]
        %v758 = vld [vmem:[%s750 + $0x38] sm:$0xff]
        %759 = vmatpush.msra.mxu0 0.0
        %760 = vmatpush.msra.mxu0 0.0
        %761 = vmatpush.msra.mxu0 0.0
        %762 = vmatpush.msra.mxu0 0.0
        %763 = vmatpush.msra.mxu0 0.0
        %764 = vmatpush.msra.mxu0 0.0
        %765 = vmatpush.msra.mxu0 0.0
        %766 = vmatpush.msra.mxu0 0.0
        %767 = vmatpush.msra.mxu0 %v758
        %768 = vmatpush.msra.mxu0 %v757
        %769 = vmatpush.msra.mxu0 %v756
        %770 = vmatpush.msra.mxu0 %v755
        %771 = vmatpush.msra.mxu0 %v754
        %772 = vmatpush.msra.mxu0 %v753
        %773 = vmatpush.msra.mxu0 %v752
        %774 = vmatpush.msra.mxu0 %v751
        %775 = vmatmul.f32.gmra.mxu0 %v241
        %v776 = vpop.f32.mrf.mxu0
        %v777 = vadd.f32 0.0, %v776
        %778 = vmatmul.f32.gmra.mxu0 %v244
        %v779 = vpop.f32.mrf.mxu0
        %v780 = vadd.f32 0.0, %v779
        %781 = vmatmul.f32.gmra.mxu0 %v247
        %v782 = vpop.f32.mrf.mxu0
        %v783 = vadd.f32 0.0, %v782
        %784 = vmatmul.f32.gmra.mxu0 %v250
        %v785 = vpop.f32.mrf.mxu0
        %v786 = vadd.f32 0.0, %v785
        %787 = vmatmul.f32.gmra.mxu0 %v253
        %v788 = vpop.f32.mrf.mxu0
        %v789 = vadd.f32 0.0, %v788
        %790 = vmatmul.f32.gmra.mxu0 %v256
        %v791 = vpop.f32.mrf.mxu0
        %v792 = vadd.f32 0.0, %v791
        %793 = vmatmul.f32.gmra.mxu0 %v259
        %v794 = vpop.f32.mrf.mxu0
        %v795 = vadd.f32 0.0, %v794
        %796 = vmatmul.f32.gmra.mxu0 %v262
        %v797 = vpop.f32.mrf.mxu0
        %v798 = vadd.f32 0.0, %v797
        %799 = vdwg.mxu0
        %v801 = vsel %vm403, %v677, 0
        %v804 = vsel %vm403, %v680, 0
        %v807 = vsel %vm403, %v683, 0
        %v810 = vsel %vm403, %v686, 0
        %v813 = vsel %vm403, %v689, 0
        %v816 = vsel %vm403, %v692, 0
        %v819 = vsel %vm403, %v695, 0
        %v822 = vsel %vm403, %v698, 0
        %v825 = vsel %vm403, %v727, 0
        %v828 = vsel %vm403, %v730, 0
        %v831 = vsel %vm403, %v733, 0
        %v834 = vsel %vm403, %v736, 0
        %v837 = vsel %vm403, %v739, 0
        %v840 = vsel %vm403, %v742, 0
        %v843 = vsel %vm403, %v745, 0
        %v846 = vsel %vm403, %v748, 0
        %848 = vmatpush.xpose.msra.mxu0 0.0
        %849 = vmatpush.xpose.msra.mxu0 0.0
        %850 = vmatpush.xpose.msra.mxu0 0.0
        %851 = vmatpush.xpose.msra.mxu0 0.0
        %852 = vmatpush.xpose.msra.mxu0 0.0
        %853 = vmatpush.xpose.msra.mxu0 0.0
        %854 = vmatpush.xpose.msra.mxu0 0.0
        %855 = vmatpush.xpose.msra.mxu0 0.0
        %856 = vmatpush.xpose.msra.mxu0 %v846
        %857 = vmatpush.xpose.msra.mxu0 %v843
        %858 = vmatpush.xpose.msra.mxu0 %v840
        %859 = vmatpush.xpose.msra.mxu0 %v837
        %860 = vmatpush.xpose.msra.mxu0 %v834
        %861 = vmatpush.xpose.msra.mxu0 %v831
        %862 = vmatpush.xpose.msra.mxu0 %v828
        %863 = vmatpush.xpose.msra.mxu0 %v825
        %864 = vmatmul.f32.gmra.mxu0 %v801
        %v865 = vpop.f32.mrf.mxu0
        %v866 = vadd.f32 0.0, %v865
        %867 = vmatmul.f32.gmra.mxu0 %v804
        %v868 = vpop.f32.mrf.mxu0
        %v869 = vadd.f32 0.0, %v868
        %870 = vmatmul.f32.gmra.mxu0 %v807
        %v871 = vpop.f32.mrf.mxu0
        %v872 = vadd.f32 0.0, %v871
        %873 = vmatmul.f32.gmra.mxu0 %v810
        %v874 = vpop.f32.mrf.mxu0
        %v875 = vadd.f32 0.0, %v874
        %876 = vmatmul.f32.gmra.mxu0 %v813
        %v877 = vpop.f32.mrf.mxu0
        %v878 = vadd.f32 0.0, %v877
        %879 = vmatmul.f32.gmra.mxu0 %v816
        %v880 = vpop.f32.mrf.mxu0
        %v881 = vadd.f32 0.0, %v880
        %882 = vmatmul.f32.gmra.mxu0 %v819
        %v883 = vpop.f32.mrf.mxu0
        %v884 = vadd.f32 0.0, %v883
        %885 = vmatmul.f32.gmra.mxu0 %v822
        %v886 = vpop.f32.mrf.mxu0
        %v887 = vadd.f32 0.0, %v886
        %888 = vdwg.mxu0
        %v889 = vsel %vm239, %v866, -inf
        %890 = vmax.xlane.f32.xlu0 %v889
        %v891 = vpop.xlane.xlu0 %890
        %v892 = vsel %vm239, %v869, -inf
        %893 = vmax.xlane.f32.xlu0 %v892
        %v894 = vpop.xlane.xlu0 %893
        %v895 = vsel %vm239, %v872, -inf
        %896 = vmax.xlane.f32.xlu0 %v895
        %v897 = vpop.xlane.xlu0 %896
        %v898 = vsel %vm239, %v875, -inf
        %899 = vmax.xlane.f32.xlu0 %v898
        %v900 = vpop.xlane.xlu0 %899
        %v901 = vsel %vm239, %v878, -inf
        %902 = vmax.xlane.f32.xlu0 %v901
        %v903 = vpop.xlane.xlu0 %902
        %v904 = vsel %vm239, %v881, -inf
        %905 = vmax.xlane.f32.xlu0 %v904
        %v906 = vpop.xlane.xlu0 %905
        %v907 = vsel %vm239, %v884, -inf
        %908 = vmax.xlane.f32.xlu0 %v907
        %v909 = vpop.xlane.xlu0 %908
        %v910 = vsel %vm239, %v887, -inf
        %911 = vmax.xlane.f32.xlu0 %v910
        %v912 = vpop.xlane.xlu0 %911
        %v913 = vsub.f32 %v866, %v891
        %v914 = vsub.f32 %v869, %v894
        %v915 = vsub.f32 %v872, %v897
        %v916 = vsub.f32 %v875, %v900
        %v917 = vsub.f32 %v878, %v903
        %v918 = vsub.f32 %v881, %v906
        %v919 = vsub.f32 %v884, %v909
        %v920 = vsub.f32 %v887, %v912
        %v921 = vmul.f32 %v913, 1.442695
        %v922 = vpow.pop %v921
        %v923 = vmul.f32 %v914, 1.442695
        %v924 = vpow.pop %v923
        %v925 = vmul.f32 %v915, 1.442695
        %v926 = vpow.pop %v925
        %v927 = vmul.f32 %v916, 1.442695
        %v928 = vpow.pop %v927
        %v929 = vmul.f32 %v917, 1.442695
        %v930 = vpow.pop %v929
        %v931 = vmul.f32 %v918, 1.442695
        %v932 = vpow.pop %v931
        %v933 = vmul.f32 %v919, 1.442695
        %v934 = vpow.pop %v933
        %v935 = vmul.f32 %v920, 1.442695
        %v936 = vpow.pop %v935
        %v937 = vsel %vm239, %v922, 0.0
        %938 = vadd.xlane.f32.xlu0 %v937
        %v939 = vpop.xlane.xlu0 %938
        %v940 = vsel %vm239, %v924, 0.0
        %941 = vadd.xlane.f32.xlu0 %v940
        %v942 = vpop.xlane.xlu0 %941
        %v943 = vsel %vm239, %v926, 0.0
        %944 = vadd.xlane.f32.xlu0 %v943
        %v945 = vpop.xlane.xlu0 %944
        %v946 = vsel %vm239, %v928, 0.0
        %947 = vadd.xlane.f32.xlu0 %v946
        %v948 = vpop.xlane.xlu0 %947
        %v949 = vsel %vm239, %v930, 0.0
        %950 = vadd.xlane.f32.xlu0 %v949
        %v951 = vpop.xlane.xlu0 %950
        %v952 = vsel %vm239, %v932, 0.0
        %953 = vadd.xlane.f32.xlu0 %v952
        %v954 = vpop.xlane.xlu0 %953
        %v955 = vsel %vm239, %v934, 0.0
        %956 = vadd.xlane.f32.xlu0 %v955
        %v957 = vpop.xlane.xlu0 %956
        %v958 = vsel %vm239, %v936, 0.0
        %959 = vadd.xlane.f32.xlu0 %v958
        %v960 = vpop.xlane.xlu0 %959
        %v962 = vsel %vm239, %v922, 0
        %v965 = vsel %vm239, %v924, 0
        %v968 = vsel %vm239, %v926, 0
        %v971 = vsel %vm239, %v928, 0
        %v974 = vsel %vm239, %v930, 0
        %v977 = vsel %vm239, %v932, 0
        %v980 = vsel %vm239, %v934, 0
        %v983 = vsel %vm239, %v936, 0
        %985 = vmatpush.msra.mxu0 0.0
        %986 = vmatpush.msra.mxu0 0.0
        %987 = vmatpush.msra.mxu0 0.0
        %988 = vmatpush.msra.mxu0 0.0
        %989 = vmatpush.msra.mxu0 0.0
        %990 = vmatpush.msra.mxu0 0.0
        %991 = vmatpush.msra.mxu0 0.0
        %992 = vmatpush.msra.mxu0 0.0
        %993 = vmatpush.msra.mxu0 %v798
        %994 = vmatpush.msra.mxu0 %v795
        %995 = vmatpush.msra.mxu0 %v792
        %996 = vmatpush.msra.mxu0 %v789
        %997 = vmatpush.msra.mxu0 %v786
        %998 = vmatpush.msra.mxu0 %v783
        %999 = vmatpush.msra.mxu0 %v780
        %1000 = vmatpush.msra.mxu0 %v777
        %1001 = vmatmul.f32.gmra.mxu0 %v962
        %v1002 = vpop.f32.mrf.mxu0
        %v1003 = vadd.f32 0.0, %v1002
        %1004 = vmatmul.f32.gmra.mxu0 %v965
        %v1005 = vpop.f32.mrf.mxu0
        %v1006 = vadd.f32 0.0, %v1005
        %1007 = vmatmul.f32.gmra.mxu0 %v968
        %v1008 = vpop.f32.mrf.mxu0
        %v1009 = vadd.f32 0.0, %v1008
        %1010 = vmatmul.f32.gmra.mxu0 %v971
        %v1011 = vpop.f32.mrf.mxu0
        %v1012 = vadd.f32 0.0, %v1011
        %1013 = vmatmul.f32.gmra.mxu0 %v974
        %v1014 = vpop.f32.mrf.mxu0
        %v1015 = vadd.f32 0.0, %v1014
        %1016 = vmatmul.f32.gmra.mxu0 %v977
        %v1017 = vpop.f32.mrf.mxu0
        %v1018 = vadd.f32 0.0, %v1017
        %1019 = vmatmul.f32.gmra.mxu0 %v980
        %v1020 = vpop.f32.mrf.mxu0
        %v1021 = vadd.f32 0.0, %v1020
        %1022 = vmatmul.f32.gmra.mxu0 %v983
        %v1023 = vpop.f32.mrf.mxu0
        %v1024 = vadd.f32 0.0, %v1023
        %1025 = vdwg.mxu0
        %v1026 = vrcp.pop %v939
        %v1027 = vrcp.pop %v942
        %v1028 = vrcp.pop %v945
        %v1029 = vrcp.pop %v948
        %v1030 = vrcp.pop %v951
        %v1031 = vrcp.pop %v954
        %v1032 = vrcp.pop %v957
        %v1033 = vrcp.pop %v960
        %v1034 = vmul.f32 %v1003, %v1026
        %v1035 = vmul.f32 %v1006, %v1027
        %v1036 = vmul.f32 %v1009, %v1028
        %v1037 = vmul.f32 %v1012, %v1029
        %v1038 = vmul.f32 %v1015, %v1030
        %v1039 = vmul.f32 %v1018, %v1031
        %v1040 = vmul.f32 %v1021, %v1032
        %v1041 = vmul.f32 %v1024, %v1033
        %s1042 = scalar_lea.vmem %s4, 32
        %v1043 = vld [vmem:[%s1042] sm:$0xff]
        %v1044 = vld [vmem:[%s1042 + $0x8] sm:$0xff]
        %v1045 = vld [vmem:[%s1042 + $0x10] sm:$0xff]
        %v1046 = vld [vmem:[%s1042 + $0x18] sm:$0xff]
        %v1048 = vsel %vm403, %v1034, 0
        %v1051 = vsel %vm403, %v1035, 0
        %v1054 = vsel %vm403, %v1036, 0
        %v1057 = vsel %vm403, %v1037, 0
        %v1060 = vsel %vm403, %v1038, 0
        %v1063 = vsel %vm403, %v1039, 0
        %v1066 = vsel %vm403, %v1040, 0
        %v1069 = vsel %vm403, %v1041, 0
        %1071 = vmatpush.msra.mxu0 0.0
        %1072 = vmatpush.msra.mxu0 0.0
        %1073 = vmatpush.msra.mxu0 0.0
        %1074 = vmatpush.msra.mxu0 0.0
        %1075 = vmatpush.msra.mxu0 0.0
        %1076 = vmatpush.msra.mxu0 0.0
        %1077 = vmatpush.msra.mxu0 0.0
        %1078 = vmatpush.msra.mxu0 0.0
        %1079 = vmatpush.msra.mxu0 0.0
        %1080 = vmatpush.msra.mxu0 0.0
        %1081 = vmatpush.msra.mxu0 0.0
        %1082 = vmatpush.msra.mxu0 0.0
        %1083 = vmatpush.msra.mxu0 %v1046
        %1084 = vmatpush.msra.mxu0 %v1045
        %1085 = vmatpush.msra.mxu0 %v1044
        %1086 = vmatpush.msra.mxu0 %v1043
        %1087 = vmatmul.f32.gmra.mxu0 %v1048
        %v1088 = vpop.f32.mrf.mxu0
        %v1089 = vadd.f32 0.0, %v1088
        %1090 = vmatmul.f32.gmra.mxu0 %v1051
        %v1091 = vpop.f32.mrf.mxu0
        %v1092 = vadd.f32 0.0, %v1091
        %1093 = vmatmul.f32.gmra.mxu0 %v1054
        %v1094 = vpop.f32.mrf.mxu0
        %v1095 = vadd.f32 0.0, %v1094
        %1096 = vmatmul.f32.gmra.mxu0 %v1057
        %v1097 = vpop.f32.mrf.mxu0
        %v1098 = vadd.f32 0.0, %v1097
        %1099 = vmatmul.f32.gmra.mxu0 %v1060
        %v1100 = vpop.f32.mrf.mxu0
        %v1101 = vadd.f32 0.0, %v1100
        %1102 = vmatmul.f32.gmra.mxu0 %v1063
        %v1103 = vpop.f32.mrf.mxu0
        %v1104 = vadd.f32 0.0, %v1103
        %1105 = vmatmul.f32.gmra.mxu0 %v1066
        %v1106 = vpop.f32.mrf.mxu0
        %v1107 = vadd.f32 0.0, %v1106
        %1108 = vmatmul.f32.gmra.mxu0 %v1069
        %v1109 = vpop.f32.mrf.mxu0
        %v1110 = vadd.f32 0.0, %v1109
        %1111 = vdwg.mxu0
        %v1113 = vsel %vm403, %v638, 0
        %v1116 = vsel %vm403, %v639, 0
        %v1119 = vsel %vm403, %v640, 0
        %v1122 = vsel %vm403, %v641, 0
        %v1125 = vsel %vm403, %v642, 0
        %v1128 = vsel %vm403, %v643, 0
        %v1131 = vsel %vm403, %v644, 0
        %v1134 = vsel %vm403, %v645, 0
        %1136 = vmatpush.msra.mxu0 0.0
        %1137 = vmatpush.msra.mxu0 0.0
        %1138 = vmatpush.msra.mxu0 0.0
        %1139 = vmatpush.msra.mxu0 0.0
        %1140 = vmatpush.msra.mxu0 0.0
        %1141 = vmatpush.msra.mxu0 0.0
        %1142 = vmatpush.msra.mxu0 0.0
        %1143 = vmatpush.msra.mxu0 0.0
        %1144 = vmatpush.msra.mxu0 0.0
        %1145 = vmatpush.msra.mxu0 0.0
        %1146 = vmatpush.msra.mxu0 0.0
        %1147 = vmatpush.msra.mxu0 0.0
        %1148 = vmatpush.msra.mxu0 %v649
        %1149 = vmatpush.msra.mxu0 %v648
        %1150 = vmatpush.msra.mxu0 %v647
        %1151 = vmatpush.msra.mxu0 %v646
        %1152 = vmatmul.f32.gmra.mxu0 %v1113
        %v1153 = vpop.f32.mrf.mxu0
        %v1154 = vadd.f32 %v1089, %v1153
        %1155 = vmatmul.f32.gmra.mxu0 %v1116
        %v1156 = vpop.f32.mrf.mxu0
        %v1157 = vadd.f32 %v1092, %v1156
        %1158 = vmatmul.f32.gmra.mxu0 %v1119
        %v1159 = vpop.f32.mrf.mxu0
        %v1160 = vadd.f32 %v1095, %v1159
        %1161 = vmatmul.f32.gmra.mxu0 %v1122
        %v1162 = vpop.f32.mrf.mxu0
        %v1163 = vadd.f32 %v1098, %v1162
        %1164 = vmatmul.f32.gmra.mxu0 %v1125
        %v1165 = vpop.f32.mrf.mxu0
        %v1166 = vadd.f32 %v1101, %v1165
        %1167 = vmatmul.f32.gmra.mxu0 %v1128
        %v1168 = vpop.f32.mrf.mxu0
        %v1169 = vadd.f32 %v1104, %v1168
        %1170 = vmatmul.f32.gmra.mxu0 %v1131
        %v1171 = vpop.f32.mrf.mxu0
        %v1172 = vadd.f32 %v1107, %v1171
        %1173 = vmatmul.f32.gmra.mxu0 %v1134
        %v1174 = vpop.f32.mrf.mxu0
        %v1175 = vadd.f32 %v1110, %v1174
        %1176 = vdwg.mxu0
        %1177 = vst.msk [vmem:[%s217] sm:$0xff] %vm239, %v1154
        %1178 = vst.msk [vmem:[%s217 + $0x8] sm:$0xff] %vm239, %v1157
        %1179 = vst.msk [vmem:[%s217 + $0x10] sm:$0xff] %vm239, %v1160
        %1180 = vst.msk [vmem:[%s217 + $0x18] sm:$0xff] %vm239, %v1163
        %1181 = vst.msk [vmem:[%s217 + $0x20] sm:$0xff] %vm239, %v1166
        %1182 = vst.msk [vmem:[%s217 + $0x28] sm:$0xff] %vm239, %v1169
        %1183 = vst.msk [vmem:[%s217 + $0x30] sm:$0xff] %vm239, %v1172
        %1184 = vst.msk [vmem:[%s217 + $0x38] sm:$0xff] %vm239, %v1175
        %s1185 = sand.u32 %s137, 1
        %s1186 = scalar_lea.sflag [#allocation3], %s1185
        %s1187 = sand.u32 %s137, 1
        %s1188 = smul.addr %s1187, 64
        %s1189 = scalar_lea.vmem [#allocation2], %s1188
        // Predicated region
        $region41: #{tpu_custom_call.1} parent=39 // pred_check
          %p1190 = pneg %p147
        $region42: #{tpu_custom_call.1} parent=39 // pred_check_branch
          %1192 = sbr.rel (%p1190) target = $region44
        $region43: #{tpu_custom_call.1} parent=39 // pred_region
          %1194 = vsyncadd %s1186, 0
          %s1195 = smul.addr %s19, 8
          %s1196 = smul.addr %s1195, 8
          %s1197 = scalar_lea.hbm %s5, %s1196
          %s1198 = sshll.u32 %s1189, 4
          %s1199 = int_to_ptr.vmem [resolvable:$true] %s1198
          %s1200 = sshll.u32 %s1197, 4
          %s1201 = int_to_ptr.hbm [resolvable:$true] %s1200
          %1206 = dma.vmem_to_hbm [thread:$0]  %s1199, 1024, %s1201, %s1186, 128, 128, 8
        $region44: #{tpu_custom_call.1} parent=39 // pred_fallthru
          _
      $region40: #{tpu_custom_call.1} parent=5 // pred_fallthru
        _
      %p1207 = scmp.le.s32.totalorder 2, %s14
      // Predicated region
      $region45: #{tpu_custom_call.1} parent=5 // pred_check
        %p1208 = pneg %p1207
      $region46: #{tpu_custom_call.1} parent=5 // pred_check_branch
        %1210 = sbr.rel (%p1208) target = $region48
      $region47: #{tpu_custom_call.1} parent=5 // pred_region
        %s1211 = ssub.s32 %s14, 2
        // Predicated region
        $region49: #{tpu_custom_call.1} parent=47 // pred_check
          %p1212 = pneg %p153
        $region50: #{tpu_custom_call.1} parent=47 // pred_check_branch
          %1214 = sbr.rel (%p1212) target = $region52
        $region51: #{tpu_custom_call.1} parent=47 // pred_region
          %s1215 = sand.u32 %s138, 1
          %s1216 = scalar_lea.sflag [#allocation3], %s1215
          %s1217 = sand.u32 %s138, 1
          %s1218 = smul.addr %s1217, 64
          %s1219 = scalar_lea.vmem [#allocation2], %s1218
          %1221 = dma.done %s1216, 1024
        $region52: #{tpu_custom_call.1} parent=47 // pred_fallthru
          _
      $region48: #{tpu_custom_call.1} parent=5 // pred_fallthru
        _
    $region6: #{tpu_custom_call.1} parent=1 // loop_footer
      %s18 = sadd.s32 1, %s14
    $region7: #{tpu_custom_call.1} parent=1 // loop_footer_branch
      %13 = sbr.rel target = $region3
    $region8: #{tpu_custom_call.1} parent=1 // loop_exit
      _
    %1222 = vsyncpa [#allocation3], 1
    %s1223 = scalar_lea.sflag [#allocation3], 1
    %1224 = vsyncpa %s1223, 1

</llo_original>
